<compile_context>
chip_gen: v7x
topology: tpu7x:2x2x1
jax: 0.10.0
libtpu: 0.0.40
codegen_flags: <defaults>
</compile_context>

<pallas_src>
import jax
import jax.numpy as jnp
from jax.experimental import pallas as pl
from jax.experimental.pallas import tpu as pltpu

_LANES = 128
_INV_SQRT2 = 0.7071067811865476


def _gelu_kernel(x_ref, o_ref):
    x = x_ref[...]
    xf = x.astype(jnp.float32)
    y = 0.5 * xf * (1.0 + jax.lax.erf(xf * jnp.float32(_INV_SQRT2)))
    o_ref[...] = y.astype(o_ref.dtype)


def _sublane_granule(dtype) -> int:
    # Minimum second-to-last-dim tile multiple per dtype width.
    itemsize = jnp.dtype(dtype).itemsize
    return {4: 8, 2: 16, 1: 32}.get(itemsize, 8)


def _gelu_2d(x2d: jax.Array, tile_rows: int) -> jax.Array:
    rows, lanes = x2d.shape
    dtype = x2d.dtype
    granule = _sublane_granule(dtype)

    # Fixed large row tile, rounded to the dtype's sublane granule.
    tr = max(granule, (tile_rows // granule) * granule)
    if rows <= tr:
        # Block == full array dims: always a legal block shape, single step.
        tr = rows
        grid = (1,)
    else:
        grid = (pl.cdiv(rows, tr),)  # partial last block is fine (elementwise)

    n = rows * lanes
    itemsize = jnp.dtype(dtype).itemsize
    cost = pl.CostEstimate(
        flops=6 * n,
        transcendentals=n,
        bytes_accessed=2 * n * itemsize,
    )

    return pl.pallas_call(
        _gelu_kernel,
        out_shape=jax.ShapeDtypeStruct((rows, lanes), dtype),
        grid_spec=pltpu.PrefetchScalarGridSpec(
            num_scalar_prefetch=0,
            grid=grid,
            in_specs=[pl.BlockSpec((tr, lanes), lambda i: (i, 0))],
            out_specs=pl.BlockSpec((tr, lanes), lambda i: (i, 0)),
        ),
        compiler_params=pltpu.CompilerParams(
            dimension_semantics=("parallel",),
        ),
        cost_estimate=cost,
    )(x2d)


def gelu(x: jax.Array, *, tile_rows: int = 4096) -> jax.Array:
    """Exact-erf GELU, matching torch: 0.5 * x * (1 + erf(x / sqrt(2)))."""
    orig_shape = x.shape
    n = x.size
    if n == 0:
        return x

    if n % _LANES == 0:
        # Fast path: flat length is already lane-aligned -> no pad, no slice,
        # no extra HBM traffic outside the kernel.
        rows = n // _LANES
        out2d = _gelu_2d(x.reshape(rows, _LANES), tile_rows)
        return out2d.reshape(orig_shape)

    # Ragged tail: pad flat length to a (sublane_granule * 128) multiple so the
    # 2D slab has a clean layout, then discard the tail on the way out.
    granule = _sublane_granule(x.dtype)
    pad_to = granule * _LANES
    n_pad = (-n) % pad_to
    x_flat = jnp.pad(x.reshape(-1), (0, n_pad))
    rows = x_flat.size // _LANES
    out2d = _gelu_2d(x_flat.reshape(rows, _LANES), tile_rows)
    return out2d.reshape(-1)[:n].reshape(orig_shape)


def _gelu_ref(x):
    return 0.5 * x * (1.0 + jax.lax.erf(x / jnp.sqrt(2.0)))


if __name__ == "__main__":
    key = jax.random.PRNGKey(0)

    # NCHW-style input consistent with a generic activation module.
    x = jax.random.normal(key, (2, 4, 16, 16), dtype=jnp.float32)
    y = jax.block_until_ready(gelu(x))
    assert y.shape == x.shape and y.dtype == x.dtype
    assert jnp.allclose(y, _gelu_ref(x), atol=1e-6, rtol=1e-6)

    # Ragged size exercises the pad/slice fallback path.
    x2 = jax.random.normal(jax.random.PRNGKey(1), (5, 7, 9), dtype=jnp.float32)
    y2 = jax.block_until_ready(gelu(x2))
    assert y2.shape == x2.shape
    assert jnp.allclose(y2, _gelu_ref(x2), atol=1e-6, rtol=1e-6)

    print("KERNEL_OK")
</pallas_src>

<mosaic_0001>
module attributes {stable_mosaic.version = 11 : i64} {
  func.func @_gelu_kernel(%arg0: i32, %arg1: memref<16x128xf32, #tpu.memory_space<vmem>>, %arg2: memref<16x128xf32, #tpu.memory_space<vmem>>) attributes {dimension_semantics = [#tpu.dimension_semantics<parallel>], iteration_bounds = array<i64: 1>, scalar_prefetch = 0 : i64, scratch_operands = 0 : i64, tpu.core_type = #tpu.core_type<tc>, window_params = [{transform_indices = @transform_0, window_bounds = array<i64: 16, 128>}, {transform_indices = @transform_1, window_bounds = array<i64: 16, 128>}]} {
    %c0 = arith.constant 0 : index
    %c0_0 = arith.constant 0 : index
    %0 = vector.load %arg1[%c0, %c0_0] : memref<16x128xf32, #tpu.memory_space<vmem>>, vector<16x128xf32>
    %cst = arith.constant 5.000000e-01 : f32
    %1 = vector.broadcast %cst : f32 to vector<16x128xf32>
    %2 = arith.mulf %1, %0 : vector<16x128xf32>
    %cst_1 = arith.constant 0.707106769 : f32
    %3 = vector.broadcast %cst_1 : f32 to vector<16x128xf32>
    %4 = arith.mulf %0, %3 : vector<16x128xf32>
    %5 = math.erf %4 : vector<16x128xf32>
    %cst_2 = arith.constant 1.000000e+00 : f32
    %6 = vector.broadcast %cst_2 : f32 to vector<16x128xf32>
    %7 = arith.addf %6, %5 : vector<16x128xf32>
    %8 = arith.mulf %2, %7 : vector<16x128xf32>
    %c0_3 = arith.constant 0 : index
    %c0_4 = arith.constant 0 : index
    %9 = vector.load %arg2[%c0_3, %c0_4] : memref<16x128xf32, #tpu.memory_space<vmem>>, vector<16x128xf32>
    tpu.vector_store %arg2[%c0_3, %c0_4], %8 {strides = array<i32>} : memref<16x128xf32, #tpu.memory_space<vmem>>, vector<16x128xf32>,
    return
  }
  func.func @transform_0(%arg0: i32) -> (i32, i32) {
    %c0_i32 = arith.constant 0 : i32
    %c0_i32_0 = arith.constant 0 : i32
    return %arg0, %c0_i32 : i32, i32
  }
  func.func @transform_1(%arg0: i32) -> (i32, i32) {
    %c0_i32 = arith.constant 0 : i32
    %c0_i32_0 = arith.constant 0 : i32
    return %arg0, %c0_i32 : i32, i32
  }
}

</mosaic_0001>

<llo_original>
// kernel: tpu_custom_call.1
$region0: #{tpu_custom_call.1}
  #allocation0 [shape = 'u32[]', space=smem, size = 0x4, offset = 0x4, fixed_abs, tag = 'smem constant byte address 0x4 - core index']
  #allocation1 [shape = 'u32[144,128]{1,0:T(1,128)}', space=vmem, size = 0x12000, scoped, tag = 'internal scratch']
  %s0 = inlined_call_operand.hbm [shape: f32[16,128], index: 0, kind: input, shape index: {}]
  %s1 = inlined_call_operand.hbm [shape: f32[16,128], index: 1, kind: output, shape index: {}]
  %s2 = sld [smem:[#allocation0]]
  $region18: #{tpu_custom_call.1} parent=0
    _
  %s4 = ssub.s32 1, %s2
  %s5 = scalar_select 0, %s4, %s2
  $region1: #{tpu_custom_call.1} parent=0
    #allocation2 [shape = 'u8[8192]{0}', space=vmem, size = 0x2000, scoped, tag = 'input window, operand 0, single buffered']
    #allocation3 [shape = 's32[1]{0}', space=sflag, size = 0x4, scoped, tag = 'scoped memory for tpu_custom_call.1']
    #allocation4 [shape = 's32[1]{0}', space=sflag, size = 0x4, scoped, tag = 'scoped memory for tpu_custom_call.1']
    #allocation5 [shape = 'u8[8192]{0}', space=vmem, size = 0x2000, scoped, tag = 'output window, operand 0, single buffered']
    %6 = vsyncpa [#allocation3], 0
    %7 = vsyncpa [#allocation4], 0
    // Predicated region
    $region2: #{tpu_custom_call.1} parent=1 // pred_check
      _
    $region3: #{tpu_custom_call.1} parent=1 // pred_check_branch
      %9 = sbr.rel (0) target = $region5
    $region4: #{tpu_custom_call.1} parent=1 // pred_region
      %s11 = ssub.s32 256, 256
      %12 = vsyncadd [#allocation3], %s11
      %s13 = sshll.u32 [#allocation2], 4
      %s14 = int_to_ptr.vmem [resolvable:$true] %s13
      %19 = dma.hbm_to_vmem [thread:$0]  %s0, 256, %s14, [#allocation3], 128, 128, 8
    $region5: #{tpu_custom_call.1} parent=1 // pred_fallthru
      _
    // Predicated region
    $region6: #{tpu_custom_call.1} parent=1 // pred_check
      _
    $region7: #{tpu_custom_call.1} parent=1 // pred_check_branch
      %21 = sbr.rel (0) target = $region9
    $region8: #{tpu_custom_call.1} parent=1 // pred_region
      %22 = dma.done [#allocation3], 256
    $region9: #{tpu_custom_call.1} parent=1 // pred_fallthru
      _
    %v23 = vld [vmem:[#allocation2] sm:$0xff]
    %v24 = vld [vmem:[#allocation2 + $0x8] sm:$0xff]
    %v25 = vmul.f32 %v23, 0.5
    %v26 = vmul.f32 %v24, 0.5
    %v27 = vmul.f32 %v23, 0.70710677
    %v28 = vmul.f32 %v24, 0.70710677
    %v29 = verf.f32.pop %v27
    %v30 = verf.f32.pop %v28
    %v31 = vadd.f32 %v29, 1.0
    %v32 = vadd.f32 %v30, 1.0
    %v33 = vmul.f32 %v25, %v31
    %v34 = vmul.f32 %v26, %v32
    %35 = vst [vmem:[#allocation5] sm:$0xff] %v33
    %36 = vst [vmem:[#allocation5 + $0x8] sm:$0xff] %v34
    // Predicated region
    $region10: #{tpu_custom_call.1} parent=1 // pred_check
      _
    $region11: #{tpu_custom_call.1} parent=1 // pred_check_branch
      %38 = sbr.rel (0) target = $region13
    $region12: #{tpu_custom_call.1} parent=1 // pred_region
      %s40 = ssub.s32 256, 256
      %41 = vsyncadd [#allocation4], %s40
      %s42 = sshll.u32 [#allocation5], 4
      %s43 = int_to_ptr.vmem [resolvable:$true] %s42
      %48 = dma.vmem_to_hbm [thread:$0]  %s43, 256, %s1, [#allocation4], 128, 128, 8
    $region13: #{tpu_custom_call.1} parent=1 // pred_fallthru
      _
    // Predicated region
    $region14: #{tpu_custom_call.1} parent=1 // pred_check
      _
    $region15: #{tpu_custom_call.1} parent=1 // pred_check_branch
      %50 = sbr.rel (0) target = $region17
    $region16: #{tpu_custom_call.1} parent=1 // pred_region
      %51 = dma.done [#allocation4], 256
    $region17: #{tpu_custom_call.1} parent=1 // pred_fallthru
      _
    %52 = vsyncpa [#allocation3], 1
    %53 = vsyncpa [#allocation4], 1

</llo_original>
